<compile_context>
chip_gen: v7x
topology: tpu7x:2x2x1
jax: 0.10.0
libtpu: 0.0.40
codegen_flags: <defaults>
</compile_context>

<pallas_src>
import jax
import jax.numpy as jnp
from jax.experimental import pallas as pl
from jax.experimental.pallas import tpu as pltpu

DIM = 32  # output dim of fc5 (the `dim` ctor arg)


def ehr_fcn_kernel(x_ref, w1_ref, b1_ref, w2_ref, b2_ref, w5_ref, b5_ref,
                   x1_ref, out_ref):
    # fc1 + ReLU
    h1 = jnp.dot(x_ref[...], w1_ref[...], preferred_element_type=jnp.float32)
    h1 = jnp.maximum(h1 + b1_ref[...], 0.0)
    # fc2 + ReLU  (this is x1)
    h2 = jnp.dot(h1, w2_ref[...], preferred_element_type=jnp.float32)
    h2 = jnp.maximum(h2 + b2_ref[...], 0.0)
    # fc5 (no activation)
    y = jnp.dot(h2, w5_ref[...], preferred_element_type=jnp.float32) + b5_ref[...]

    # Direct stores into the two output refs (no concatenate / pad temp).
    x1_ref[...] = h2.astype(x1_ref.dtype)
    out_ref[...] = y.astype(out_ref.dtype)


def _round_up(x, m):
    return ((x + m - 1) // m) * m


def _choose_tile(bs8):
    """Batch tile: single step up to 1024 rows; else >=2 steps of <=2048 rows."""
    if bs8 <= 1024:
        return bs8
    num_steps = max(2, pl.cdiv(bs8, 2048))  # >=2 so v7x megacore shards the batch
    return _round_up(pl.cdiv(bs8, num_steps), 8)


def ehr_fcn_forward(x, params):
    """x: batch-leading array with 26 trailing elements total (like .view(bs, 26))."""
    bs = x.shape[0]
    x2d = x.reshape(bs, 26).astype(jnp.float32)
    w1, b1, w2, b2, w5, b5 = params
    dim = w5.shape[1]

    bs8 = _round_up(bs, 8)
    tile_b = _choose_tile(bs8)
    bs_pad = _round_up(bs8, tile_b)
    if bs_pad != bs:
        x2d = jnp.pad(x2d, ((0, bs_pad - bs), (0, 0)))
    grid = (bs_pad // tile_b,)

    # Advisory cost estimate for XLA scheduling around the custom call.
    weight_bytes = sum(int(p.size) * p.dtype.itemsize for p in params)
    cost = pl.CostEstimate(
        flops=2 * bs_pad * (26 * 128 + 128 * 64 + 64 * dim),
        transcendentals=0,
        bytes_accessed=bs_pad * (26 + 64 + dim) * 4 + weight_bytes,
    )

    x1, out = pl.pallas_call(
        ehr_fcn_kernel,
        out_shape=(
            jax.ShapeDtypeStruct((bs_pad, 64), jnp.float32),
            jax.ShapeDtypeStruct((bs_pad, dim), jnp.float32),
        ),
        grid=grid,
        in_specs=[
            # batch-tiled activation (auto double-buffered along the grid)
            pl.BlockSpec((tile_b, 26), lambda i: (i, 0)),
            # weights / biases: full-array blocks, constant index_map -> DMA'd
            # once and kept VMEM-resident across all grid steps.
            pl.BlockSpec((26, 128), lambda i: (0, 0)),
            pl.BlockSpec((1, 128), lambda i: (0, 0)),
            pl.BlockSpec((128, 64), lambda i: (0, 0)),
            pl.BlockSpec((1, 64), lambda i: (0, 0)),
            pl.BlockSpec((64, dim), lambda i: (0, 0)),
            pl.BlockSpec((1, dim), lambda i: (0, 0)),
        ],
        out_specs=(
            pl.BlockSpec((tile_b, 64), lambda i: (i, 0)),
            pl.BlockSpec((tile_b, dim), lambda i: (i, 0)),
        ),
        compiler_params=pltpu.CompilerParams(
            dimension_semantics=("parallel",)),
        cost_estimate=cost,
    )(x2d, w1, b1, w2, b2, w5, b5)

    if bs_pad != bs:
        x1 = x1[:bs]
        out = out[:bs]
    return x1, out


def init_params(key, dim):
    """Deterministic init matching nn.Linear shapes (weights stored as (in, out))."""
    ks = jax.random.split(key, 6)

    def linear(kw, kb, fan_in, fan_out):
        bound = 1.0 / jnp.sqrt(fan_in)
        w = jax.random.uniform(kw, (fan_in, fan_out), jnp.float32, -bound, bound)
        b = jax.random.uniform(kb, (1, fan_out), jnp.float32, -bound, bound)
        return w, b

    w1, b1 = linear(ks[0], ks[1], 26, 128)
    w2, b2 = linear(ks[2], ks[3], 128, 64)
    w5, b5 = linear(ks[4], ks[5], 64, dim)
    return (w1, b1, w2, b2, w5, b5)


def reference_forward(x, params):
    w1, b1, w2, b2, w5, b5 = params
    bs = x.shape[0]
    h = x.reshape(bs, 26).astype(jnp.float32)
    h = jnp.maximum(h @ w1 + b1, 0.0)
    h = jnp.maximum(h @ w2 + b2, 0.0)
    return h, h @ w5 + b5


if __name__ == "__main__":
    key = jax.random.PRNGKey(0)
    k_params, k_x = jax.random.split(key)

    params = init_params(k_params, DIM)

    # Small shape check (bs=8) plus a non-multiple-of-8 batch to exercise padding.
    for bs in (8, 300):
        x = jax.random.normal(jax.random.fold_in(k_x, bs), (bs, 26), jnp.float32)
        x1, out = ehr_fcn_forward(x, params)
        jax.block_until_ready((x1, out))

        x1_ref, out_ref = reference_forward(x, params)
        assert x1.shape == (bs, 64) and out.shape == (bs, DIM)
        assert jnp.allclose(x1, x1_ref, atol=1e-5, rtol=1e-5)
        assert jnp.allclose(out, out_ref, atol=1e-5, rtol=1e-5)

    print("KERNEL_OK")
</pallas_src>

<mosaic_0001>
module attributes {stable_mosaic.version = 11 : i64} {
  func.func @ehr_fcn_kernel(%arg0: i32, %arg1: memref<8x26xf32, #tpu.memory_space<vmem>>, %arg2: memref<26x128xf32, #tpu.memory_space<vmem>>, %arg3: memref<1x128xf32, #tpu.memory_space<vmem>>, %arg4: memref<128x64xf32, #tpu.memory_space<vmem>>, %arg5: memref<1x64xf32, #tpu.memory_space<vmem>>, %arg6: memref<64x32xf32, #tpu.memory_space<vmem>>, %arg7: memref<1x32xf32, #tpu.memory_space<vmem>>, %arg8: memref<8x64xf32, #tpu.memory_space<vmem>>, %arg9: memref<8x32xf32, #tpu.memory_space<vmem>>) attributes {dimension_semantics = [#tpu.dimension_semantics<parallel>], iteration_bounds = array<i64: 1>, scalar_prefetch = 0 : i64, scratch_operands = 0 : i64, tpu.core_type = #tpu.core_type<tc>, window_params = [{transform_indices = @transform_0, window_bounds = array<i64: 8, 26>}, {pipeline_mode = #tpu.pipeline_mode<synchronous>, transform_indices = @transform_1, window_bounds = array<i64: 26, 128>}, {pipeline_mode = #tpu.pipeline_mode<synchronous>, transform_indices = @transform_2, window_bounds = array<i64: 1, 128>}, {pipeline_mode = #tpu.pipeline_mode<synchronous>, transform_indices = @transform_3, window_bounds = array<i64: 128, 64>}, {pipeline_mode = #tpu.pipeline_mode<synchronous>, transform_indices = @transform_4, window_bounds = array<i64: 1, 64>}, {pipeline_mode = #tpu.pipeline_mode<synchronous>, transform_indices = @transform_5, window_bounds = array<i64: 64, 32>}, {pipeline_mode = #tpu.pipeline_mode<synchronous>, transform_indices = @transform_6, window_bounds = array<i64: 1, 32>}, {transform_indices = @transform_7, window_bounds = array<i64: 8, 64>}, {transform_indices = @transform_8, window_bounds = array<i64: 8, 32>}]} {
    %c0 = arith.constant 0 : index
    %c0_0 = arith.constant 0 : index
    %0 = vector.load %arg1[%c0, %c0_0] : memref<8x26xf32, #tpu.memory_space<vmem>>, vector<8x26xf32>
    %c0_1 = arith.constant 0 : index
    %c0_2 = arith.constant 0 : index
    %1 = vector.load %arg2[%c0_1, %c0_2] : memref<26x128xf32, #tpu.memory_space<vmem>>, vector<26x128xf32>
    %cst = arith.constant dense<0.000000e+00> : vector<8x128xf32>
    %2 = tpu.matmul %0, %1, %cst {dimension_numbers = #tpu.dot_dimension_numbers<[1], [0], [0], [1], [0, 0, 1, 1], [], []>} : vector<8x26xf32>, vector<26x128xf32>, vector<8x128xf32> -> vector<8x128xf32>
    %c0_3 = arith.constant 0 : index
    %c0_4 = arith.constant 0 : index
    %3 = vector.load %arg3[%c0_3, %c0_4] : memref<1x128xf32, #tpu.memory_space<vmem>>, vector<1x128xf32>
    %4 = vector.broadcast %3 : vector<1x128xf32> to vector<8x128xf32>
    %5 = arith.addf %2, %4 : vector<8x128xf32>
    %cst_5 = arith.constant 0.000000e+00 : f32
    %6 = vector.broadcast %cst_5 : f32 to vector<8x128xf32>
    %7 = arith.maximumf %5, %6 : vector<8x128xf32>
    %c0_6 = arith.constant 0 : index
    %c0_7 = arith.constant 0 : index
    %8 = vector.load %arg4[%c0_6, %c0_7] : memref<128x64xf32, #tpu.memory_space<vmem>>, vector<128x64xf32>
    %cst_8 = arith.constant dense<0.000000e+00> : vector<8x64xf32>
    %9 = tpu.matmul %7, %8, %cst_8 {dimension_numbers = #tpu.dot_dimension_numbers<[1], [0], [0], [1], [0, 0, 1, 1], [], []>} : vector<8x128xf32>, vector<128x64xf32>, vector<8x64xf32> -> vector<8x64xf32>
    %c0_9 = arith.constant 0 : index
    %c0_10 = arith.constant 0 : index
    %10 = vector.load %arg5[%c0_9, %c0_10] : memref<1x64xf32, #tpu.memory_space<vmem>>, vector<1x64xf32>
    %11 = vector.broadcast %10 : vector<1x64xf32> to vector<8x64xf32>
    %12 = arith.addf %9, %11 : vector<8x64xf32>
    %cst_11 = arith.constant 0.000000e+00 : f32
    %13 = vector.broadcast %cst_11 : f32 to vector<8x64xf32>
    %14 = arith.maximumf %12, %13 : vector<8x64xf32>
    %c0_12 = arith.constant 0 : index
    %c0_13 = arith.constant 0 : index
    %15 = vector.load %arg6[%c0_12, %c0_13] : memref<64x32xf32, #tpu.memory_space<vmem>>, vector<64x32xf32>
    %cst_14 = arith.constant dense<0.000000e+00> : vector<8x32xf32>
    %16 = tpu.matmul %14, %15, %cst_14 {dimension_numbers = #tpu.dot_dimension_numbers<[1], [0], [0], [1], [0, 0, 1, 1], [], []>} : vector<8x64xf32>, vector<64x32xf32>, vector<8x32xf32> -> vector<8x32xf32>
    %c0_15 = arith.constant 0 : index
    %c0_16 = arith.constant 0 : index
    %17 = vector.load %arg7[%c0_15, %c0_16] : memref<1x32xf32, #tpu.memory_space<vmem>>, vector<1x32xf32>
    %18 = vector.broadcast %17 : vector<1x32xf32> to vector<8x32xf32>
    %19 = arith.addf %16, %18 : vector<8x32xf32>
    %c0_17 = arith.constant 0 : index
    %c0_18 = arith.constant 0 : index
    %20 = vector.load %arg8[%c0_17, %c0_18] : memref<8x64xf32, #tpu.memory_space<vmem>>, vector<8x64xf32>
    tpu.vector_store %arg8[%c0_17, %c0_18], %14 {strides = array<i32>} : memref<8x64xf32, #tpu.memory_space<vmem>>, vector<8x64xf32>,
    %c0_19 = arith.constant 0 : index
    %c0_20 = arith.constant 0 : index
    %21 = vector.load %arg9[%c0_19, %c0_20] : memref<8x32xf32, #tpu.memory_space<vmem>>, vector<8x32xf32>
    tpu.vector_store %arg9[%c0_19, %c0_20], %19 {strides = array<i32>} : memref<8x32xf32, #tpu.memory_space<vmem>>, vector<8x32xf32>,
    return
  }
  func.func @transform_0(%arg0: i32) -> (i32, i32) {
    %c0_i32 = arith.constant 0 : i32
    %c0_i32_0 = arith.constant 0 : i32
    return %arg0, %c0_i32 : i32, i32
  }
  func.func @transform_1(%arg0: i32) -> (i32, i32) {
    %c0_i32 = arith.constant 0 : i32
    %c0_i32_0 = arith.constant 0 : i32
    %c0_i32_1 = arith.constant 0 : i32
    return %c0_i32, %c0_i32_0 : i32, i32
  }
  func.func @transform_2(%arg0: i32) -> (i32, i32) {
    %c0_i32 = arith.constant 0 : i32
    %c0_i32_0 = arith.constant 0 : i32
    %c0_i32_1 = arith.constant 0 : i32
    return %c0_i32, %c0_i32_0 : i32, i32
  }
  func.func @transform_3(%arg0: i32) -> (i32, i32) {
    %c0_i32 = arith.constant 0 : i32
    %c0_i32_0 = arith.constant 0 : i32
    %c0_i32_1 = arith.constant 0 : i32
    return %c0_i32, %c0_i32_0 : i32, i32
  }
  func.func @transform_4(%arg0: i32) -> (i32, i32) {
    %c0_i32 = arith.constant 0 : i32
    %c0_i32_0 = arith.constant 0 : i32
    %c0_i32_1 = arith.constant 0 : i32
    return %c0_i32, %c0_i32_0 : i32, i32
  }
  func.func @transform_5(%arg0: i32) -> (i32, i32) {
    %c0_i32 = arith.constant 0 : i32
    %c0_i32_0 = arith.constant 0 : i32
    %c0_i32_1 = arith.constant 0 : i32
    return %c0_i32, %c0_i32_0 : i32, i32
  }
  func.func @transform_6(%arg0: i32) -> (i32, i32) {
    %c0_i32 = arith.constant 0 : i32
    %c0_i32_0 = arith.constant 0 : i32
    %c0_i32_1 = arith.constant 0 : i32
    return %c0_i32, %c0_i32_0 : i32, i32
  }
  func.func @transform_7(%arg0: i32) -> (i32, i32) {
    %c0_i32 = arith.constant 0 : i32
    %c0_i32_0 = arith.constant 0 : i32
    return %arg0, %c0_i32 : i32, i32
  }
  func.func @transform_8(%arg0: i32) -> (i32, i32) {
    %c0_i32 = arith.constant 0 : i32
    %c0_i32_0 = arith.constant 0 : i32
    return %arg0, %c0_i32 : i32, i32
  }
}

</mosaic_0001>

<llo_original>
// kernel: tpu_custom_call.1
$region0: #{tpu_custom_call.1}
  #allocation0 [shape = 'u32[]', space=smem, size = 0x4, offset = 0x4, fixed_abs, tag = 'smem constant byte address 0x4 - core index']
  #allocation1 [shape = 'u32[144,128]{1,0:T(1,128)}', space=vmem, size = 0x12000, scoped, tag = 'internal scratch']
  %s0 = inlined_call_operand.vmem [shape: f32[8,26], index: 0, kind: input, shape index: {}]
  %s1 = inlined_call_operand.vmem [shape: f32[26,128], index: 1, kind: input, shape index: {}]
  %s2 = inlined_call_operand.vmem [shape: f32[1,128], index: 2, kind: input, shape index: {}]
  %s3 = inlined_call_operand.vmem [shape: f32[128,64], index: 3, kind: input, shape index: {}]
  %s4 = inlined_call_operand.vmem [shape: f32[1,64], index: 4, kind: input, shape index: {}]
  %s5 = inlined_call_operand.vmem [shape: f32[64,32], index: 5, kind: input, shape index: {}]
  %s6 = inlined_call_operand.vmem [shape: f32[1,32], index: 6, kind: input, shape index: {}]
  %s7 = inlined_call_operand.hbm [shape: f32[8,64], index: 7, kind: output, shape index: {0}]
  %s8 = inlined_call_operand.hbm [shape: f32[8,32], index: 8, kind: output, shape index: {1}]
  %9 = xla_tuple %s7, %s8
  %s10 = sld [smem:[#allocation0]]
  $region46: #{tpu_custom_call.1} parent=0
    _
  %s12 = ssub.s32 1, %s10
  %s13 = scalar_select 0, %s12, %s10
  $region1: #{tpu_custom_call.1} parent=0
    #allocation2 [shape = 'u8[4096]{0}', space=vmem, size = 0x1000, scoped, tag = 'output window, operand 0, single buffered']
    #allocation3 [shape = 's32[1]{0}', space=sflag, size = 0x4, scoped, tag = 'scoped memory for tpu_custom_call.1']
    #allocation4 [shape = 'u8[4096]{0}', space=vmem, size = 0x1000, scoped, tag = 'output window, operand 1, single buffered']
    #allocation5 [shape = 's32[1]{0}', space=sflag, size = 0x4, scoped, tag = 'scoped memory for tpu_custom_call.1']
    %14 = vsyncpa [#allocation3], 0
    %15 = vsyncpa [#allocation5], 0
    // Predicated region
    $region2: #{tpu_custom_call.1} parent=1 // pred_check
      _
    $region3: #{tpu_custom_call.1} parent=1 // pred_check_branch
      %17 = sbr.rel (0) target = $region5
    $region4: #{tpu_custom_call.1} parent=1 // pred_region
      _
    $region5: #{tpu_custom_call.1} parent=1 // pred_fallthru
      _
    // Predicated region
    $region6: #{tpu_custom_call.1} parent=1 // pred_check
      _
    $region7: #{tpu_custom_call.1} parent=1 // pred_check_branch
      %19 = sbr.rel (0) target = $region9
    $region8: #{tpu_custom_call.1} parent=1 // pred_region
      _
    $region9: #{tpu_custom_call.1} parent=1 // pred_fallthru
      _
    // Predicated region
    $region10: #{tpu_custom_call.1} parent=1 // pred_check
      _
    $region11: #{tpu_custom_call.1} parent=1 // pred_check_branch
      %21 = sbr.rel (0) target = $region13
    $region12: #{tpu_custom_call.1} parent=1 // pred_region
      _
    $region13: #{tpu_custom_call.1} parent=1 // pred_fallthru
      _
    // Predicated region
    $region14: #{tpu_custom_call.1} parent=1 // pred_check
      _
    $region15: #{tpu_custom_call.1} parent=1 // pred_check_branch
      %23 = sbr.rel (0) target = $region17
    $region16: #{tpu_custom_call.1} parent=1 // pred_region
      _
    $region17: #{tpu_custom_call.1} parent=1 // pred_fallthru
      _
    // Predicated region
    $region18: #{tpu_custom_call.1} parent=1 // pred_check
      _
    $region19: #{tpu_custom_call.1} parent=1 // pred_check_branch
      %25 = sbr.rel (0) target = $region21
    $region20: #{tpu_custom_call.1} parent=1 // pred_region
      _
    $region21: #{tpu_custom_call.1} parent=1 // pred_fallthru
      _
    // Predicated region
    $region22: #{tpu_custom_call.1} parent=1 // pred_check
      _
    $region23: #{tpu_custom_call.1} parent=1 // pred_check_branch
      %27 = sbr.rel (0) target = $region25
    $region24: #{tpu_custom_call.1} parent=1 // pred_region
      _
    $region25: #{tpu_custom_call.1} parent=1 // pred_fallthru
      _
    // Predicated region
    $region26: #{tpu_custom_call.1} parent=1 // pred_check
      _
    $region27: #{tpu_custom_call.1} parent=1 // pred_check_branch
      %29 = sbr.rel (0) target = $region29
    $region28: #{tpu_custom_call.1} parent=1 // pred_region
      _
    $region29: #{tpu_custom_call.1} parent=1 // pred_fallthru
      _
    %v30 = vld [vmem:[%s0] sm:$0xff]
    %v31 = vld [vmem:[%s1] sm:$0xff]
    %v32 = vld [vmem:[%s1 + $0x8] sm:$0xff]
    %v33 = vld [vmem:[%s1 + $0x10] sm:$0xff]
    %v34 = vld [vmem:[%s1 + $0x18] sm:$0x3]
    %v35 = vld [vmem:[%s2] sm:$0x1]
    %v37 = vlaneseq
    %v38 = vshrl.u32 %v37, 7
    %v39 = vsub.s32 0, %v38
    %v40 = vrot.slane %v35, %v39
    %vm42 = vcmask 211968
    %v44 = vsel %vm42, %v30, 0
    %vm46 = vcmask 1041408
    %v48 = vsel %vm46, %v34, 0
    %50 = vmatprep.subr.mxu0 0.0
    %51 = vmatpush1.msra.mxu0 %v31
    %52 = vmatprep.subr.mxu0 0.0
    %53 = vmatpush1.msra.mxu0 %v32
    %54 = vmatprep.subr.mxu0 0.0
    %55 = vmatpush1.msra.mxu0 %v33
    %56 = vmatprep.subr.mxu0 0.0
    %57 = vmatpush1.msra.mxu0 %v48
    %58 = vmatprep.subr.mxu0 0.0
    %59 = vmatpush1.msra.mxu0 0.0
    %60 = vmatprep.subr.mxu0 0.0
    %61 = vmatpush1.msra.mxu0 0.0
    %62 = vmatprep.subr.mxu0 0.0
    %63 = vmatpush1.msra.mxu0 0.0
    %64 = vmatprep.subr.mxu0 0.0
    %65 = vmatpush1.msra.mxu0 0.0
    %66 = vmatprep.subr.mxu0 0.0
    %67 = vmatpush1.msra.mxu0 0.0
    %68 = vmatprep.subr.mxu0 0.0
    %69 = vmatpush1.msra.mxu0 0.0
    %70 = vmatprep.subr.mxu0 0.0
    %71 = vmatpush1.msra.mxu0 0.0
    %72 = vmatprep.subr.mxu0 0.0
    %73 = vmatpush1.msra.mxu0 0.0
    %74 = vmatprep.subr.mxu0 0.0
    %75 = vmatpush1.msra.mxu0 0.0
    %76 = vmatprep.subr.mxu0 0.0
    %77 = vmatpush1.msra.mxu0 0.0
    %78 = vmatprep.subr.mxu0 0.0
    %79 = vmatpush1.msra.mxu0 0.0
    %80 = vmatprep.subr.mxu0 0.0
    %81 = vmatpush1.msra.mxu0 0.0
    %82 = vmatprep.subr.mxu0 0.0
    %83 = vmatpush1.msra.mxu0 0.0
    %84 = vmatprep.subr.mxu0 0.0
    %85 = vmatpush1.msra.mxu0 0.0
    %86 = vmatprep.subr.mxu0 0.0
    %87 = vmatpush1.msra.mxu0 0.0
    %88 = vmatprep.subr.mxu0 0.0
    %89 = vmatpush1.msra.mxu0 0.0
    %90 = vmatprep.subr.mxu0 0.0
    %91 = vmatpush1.msra.mxu0 0.0
    %92 = vmatprep.subr.mxu0 0.0
    %93 = vmatpush1.msra.mxu0 0.0
    %94 = vmatprep.subr.mxu0 0.0
    %95 = vmatpush1.msra.mxu0 0.0
    %96 = vmatprep.subr.mxu0 0.0
    %97 = vmatpush1.msra.mxu0 0.0
    %98 = vmatprep.subr.mxu0 0.0
    %99 = vmatpush1.msra.mxu0 0.0
    %100 = vmatprep.subr.mxu0 0.0
    %101 = vmatpush1.msra.mxu0 0.0
    %102 = vmatprep.subr.mxu0 0.0
    %103 = vmatpush1.msra.mxu0 0.0
    %104 = vmatprep.subr.mxu0 0.0
    %105 = vmatpush1.msra.mxu0 0.0
    %106 = vmatprep.subr.mxu0 0.0
    %107 = vmatpush1.msra.mxu0 0.0
    %108 = vmatprep.subr.mxu0 0.0
    %109 = vmatpush1.msra.mxu0 0.0
    %110 = vmatprep.subr.mxu0 0.0
    %111 = vmatpush1.msra.mxu0 0.0
    %112 = vmatprep.subr.mxu0 0.0
    %113 = vmatpush1.msra.mxu0 0.0
    %114 = vmatprep.mubr.f32.mxu0 0.0
    %115 = vmatmul.mubr.f32.gmra.mrb[0].mxu0 %v44
    %v116 = vpop.f32.mrb[0].mxu0
    %v117 = vadd.f32 %v40, %v116
    %v118 = vpop.f32.mrb[0].mxu0
    %119 = vdwg.mxu0
    %v120 = vmax.f32 %v117, 0.0
    %v121 = vld [vmem:[%s3] sm:$0xff]
    %v122 = vld [vmem:[%s3 + $0x8] sm:$0xff]
    %v123 = vld [vmem:[%s3 + $0x10] sm:$0xff]
    %v124 = vld [vmem:[%s3 + $0x18] sm:$0xff]
    %v125 = vld [vmem:[%s3 + $0x20] sm:$0xff]
    %v126 = vld [vmem:[%s3 + $0x28] sm:$0xff]
    %v127 = vld [vmem:[%s3 + $0x30] sm:$0xff]
    %v128 = vld [vmem:[%s3 + $0x38] sm:$0xff]
    %v129 = vld [vmem:[%s3 + $0x40] sm:$0xff]
    %v130 = vld [vmem:[%s3 + $0x48] sm:$0xff]
    %v131 = vld [vmem:[%s3 + $0x50] sm:$0xff]
    %v132 = vld [vmem:[%s3 + $0x58] sm:$0xff]
    %v133 = vld [vmem:[%s3 + $0x60] sm:$0xff]
    %v134 = vld [vmem:[%s3 + $0x68] sm:$0xff]
    %v135 = vld [vmem:[%s3 + $0x70] sm:$0xff]
    %v136 = vld [vmem:[%s3 + $0x78] sm:$0xff]
    %v137 = vld [vmem:[%s4] sm:$0x1]
    %v139 = vlaneseq
    %v140 = vshrl.u32 %v139, 7
    %v141 = vsub.s32 0, %v140
    %v142 = vrot.slane %v137, %v141
    %144 = vmatprep.subr.mxu0 0.0
    %145 = vmatpush1.msra.mxu0 %v121
    %146 = vmatprep.subr.mxu0 0.0
    %147 = vmatpush1.msra.mxu0 %v122
    %148 = vmatprep.subr.mxu0 0.0
    %149 = vmatpush1.msra.mxu0 %v123
    %150 = vmatprep.subr.mxu0 0.0
    %151 = vmatpush1.msra.mxu0 %v124
    %152 = vmatprep.subr.mxu0 0.0
    %153 = vmatpush1.msra.mxu0 %v125
    %154 = vmatprep.subr.mxu0 0.0
    %155 = vmatpush1.msra.mxu0 %v126
    %156 = vmatprep.subr.mxu0 0.0
    %157 = vmatpush1.msra.mxu0 %v127
    %158 = vmatprep.subr.mxu0 0.0
    %159 = vmatpush1.msra.mxu0 %v128
    %160 = vmatprep.subr.mxu0 0.0
    %161 = vmatpush1.msra.mxu0 %v129
    %162 = vmatprep.subr.mxu0 0.0
    %163 = vmatpush1.msra.mxu0 %v130
    %164 = vmatprep.subr.mxu0 0.0
    %165 = vmatpush1.msra.mxu0 %v131
    %166 = vmatprep.subr.mxu0 0.0
    %167 = vmatpush1.msra.mxu0 %v132
    %168 = vmatprep.subr.mxu0 0.0
    %169 = vmatpush1.msra.mxu0 %v133
    %170 = vmatprep.subr.mxu0 0.0
    %171 = vmatpush1.msra.mxu0 %v134
    %172 = vmatprep.subr.mxu0 0.0
    %173 = vmatpush1.msra.mxu0 %v135
    %174 = vmatprep.subr.mxu0 0.0
    %175 = vmatpush1.msra.mxu0 %v136
    %176 = vmatprep.subr.mxu0 0.0
    %177 = vmatpush1.msra.mxu0 0.0
    %178 = vmatprep.subr.mxu0 0.0
    %179 = vmatpush1.msra.mxu0 0.0
    %180 = vmatprep.subr.mxu0 0.0
    %181 = vmatpush1.msra.mxu0 0.0
    %182 = vmatprep.subr.mxu0 0.0
    %183 = vmatpush1.msra.mxu0 0.0
    %184 = vmatprep.subr.mxu0 0.0
    %185 = vmatpush1.msra.mxu0 0.0
    %186 = vmatprep.subr.mxu0 0.0
    %187 = vmatpush1.msra.mxu0 0.0
    %188 = vmatprep.subr.mxu0 0.0
    %189 = vmatpush1.msra.mxu0 0.0
    %190 = vmatprep.subr.mxu0 0.0
    %191 = vmatpush1.msra.mxu0 0.0
    %192 = vmatprep.subr.mxu0 0.0
    %193 = vmatpush1.msra.mxu0 0.0
    %194 = vmatprep.subr.mxu0 0.0
    %195 = vmatpush1.msra.mxu0 0.0
    %196 = vmatprep.subr.mxu0 0.0
    %197 = vmatpush1.msra.mxu0 0.0
    %198 = vmatprep.subr.mxu0 0.0
    %199 = vmatpush1.msra.mxu0 0.0
    %200 = vmatprep.subr.mxu0 0.0
    %201 = vmatpush1.msra.mxu0 0.0
    %202 = vmatprep.subr.mxu0 0.0
    %203 = vmatpush1.msra.mxu0 0.0
    %204 = vmatprep.subr.mxu0 0.0
    %205 = vmatpush1.msra.mxu0 0.0
    %206 = vmatprep.subr.mxu0 0.0
    %207 = vmatpush1.msra.mxu0 0.0
    %208 = vmatprep.mubr.f32.mxu0 0.0
    %209 = vmatmul.mubr.f32.gmra.mrb[0].mxu0 %v120
    %v210 = vpop.f32.mrb[0].mxu0
    %v211 = vadd.f32 %v142, %v210
    %v212 = vpop.f32.mrb[0].mxu0
    %213 = vdwg.mxu0
    %v214 = vmax.f32 %v211, 0.0
    %v215 = vld [vmem:[%s5] sm:$0xff]
    %v216 = vld [vmem:[%s5 + $0x8] sm:$0xff]
    %v217 = vld [vmem:[%s5 + $0x10] sm:$0xff]
    %v218 = vld [vmem:[%s5 + $0x18] sm:$0xff]
    %v219 = vld [vmem:[%s5 + $0x20] sm:$0xff]
    %v220 = vld [vmem:[%s5 + $0x28] sm:$0xff]
    %v221 = vld [vmem:[%s5 + $0x30] sm:$0xff]
    %v222 = vld [vmem:[%s5 + $0x38] sm:$0xff]
    %v223 = vld [vmem:[%s6] sm:$0x1]
    %v225 = vlaneseq
    %v226 = vshrl.u32 %v225, 7
    %v227 = vsub.s32 0, %v226
    %v228 = vrot.slane %v223, %v227
    %vm230 = vcmask 523264
    %v232 = vsel %vm230, %v214, 0
    %234 = vmatprep.subr.mxu0 0.0
    %235 = vmatpush1.msra.mxu0 %v215
    %236 = vmatprep.subr.mxu0 0.0
    %237 = vmatpush1.msra.mxu0 %v216
    %238 = vmatprep.subr.mxu0 0.0
    %239 = vmatpush1.msra.mxu0 %v217
    %240 = vmatprep.subr.mxu0 0.0
    %241 = vmatpush1.msra.mxu0 %v218
    %242 = vmatprep.subr.mxu0 0.0
    %243 = vmatpush1.msra.mxu0 %v219
    %244 = vmatprep.subr.mxu0 0.0
    %245 = vmatpush1.msra.mxu0 %v220
    %246 = vmatprep.subr.mxu0 0.0
    %247 = vmatpush1.msra.mxu0 %v221
    %248 = vmatprep.subr.mxu0 0.0
    %249 = vmatpush1.msra.mxu0 %v222
    %250 = vmatprep.subr.mxu0 0.0
    %251 = vmatpush1.msra.mxu0 0.0
    %252 = vmatprep.subr.mxu0 0.0
    %253 = vmatpush1.msra.mxu0 0.0
    %254 = vmatprep.subr.mxu0 0.0
    %255 = vmatpush1.msra.mxu0 0.0
    %256 = vmatprep.subr.mxu0 0.0
    %257 = vmatpush1.msra.mxu0 0.0
    %258 = vmatprep.subr.mxu0 0.0
    %259 = vmatpush1.msra.mxu0 0.0
    %260 = vmatprep.subr.mxu0 0.0
    %261 = vmatpush1.msra.mxu0 0.0
    %262 = vmatprep.subr.mxu0 0.0
    %263 = vmatpush1.msra.mxu0 0.0
    %264 = vmatprep.subr.mxu0 0.0
    %265 = vmatpush1.msra.mxu0 0.0
    %266 = vmatprep.subr.mxu0 0.0
    %267 = vmatpush1.msra.mxu0 0.0
    %268 = vmatprep.subr.mxu0 0.0
    %269 = vmatpush1.msra.mxu0 0.0
    %270 = vmatprep.subr.mxu0 0.0
    %271 = vmatpush1.msra.mxu0 0.0
    %272 = vmatprep.subr.mxu0 0.0
    %273 = vmatpush1.msra.mxu0 0.0
    %274 = vmatprep.subr.mxu0 0.0
    %275 = vmatpush1.msra.mxu0 0.0
    %276 = vmatprep.subr.mxu0 0.0
    %277 = vmatpush1.msra.mxu0 0.0
    %278 = vmatprep.subr.mxu0 0.0
    %279 = vmatpush1.msra.mxu0 0.0
    %280 = vmatprep.subr.mxu0 0.0
    %281 = vmatpush1.msra.mxu0 0.0
    %282 = vmatprep.subr.mxu0 0.0
    %283 = vmatpush1.msra.mxu0 0.0
    %284 = vmatprep.subr.mxu0 0.0
    %285 = vmatpush1.msra.mxu0 0.0
    %286 = vmatprep.subr.mxu0 0.0
    %287 = vmatpush1.msra.mxu0 0.0
    %288 = vmatprep.subr.mxu0 0.0
    %289 = vmatpush1.msra.mxu0 0.0
    %290 = vmatprep.subr.mxu0 0.0
    %291 = vmatpush1.msra.mxu0 0.0
    %292 = vmatprep.subr.mxu0 0.0
    %293 = vmatpush1.msra.mxu0 0.0
    %294 = vmatprep.subr.mxu0 0.0
    %295 = vmatpush1.msra.mxu0 0.0
    %296 = vmatprep.subr.mxu0 0.0
    %297 = vmatpush1.msra.mxu0 0.0
    %298 = vmatprep.mubr.f32.mxu0 0.0
    %299 = vmatmul.mubr.f32.gmra.mrb[0].mxu0 %v232
    %v300 = vpop.f32.mrb[0].mxu0
    %v301 = vadd.f32 %v228, %v300
    %v302 = vpop.f32.mrb[0].mxu0
    %303 = vdwg.mxu0
    %304 = vst.msk [vmem:[#allocation2] sm:$0xff] %vm230, %v214
    %vm305 = vcmask 261120
    %306 = vst.msk [vmem:[#allocation4] sm:$0xff] %vm305, %v301
    // Predicated region
    $region30: #{tpu_custom_call.1} parent=1 // pred_check
      _
    $region31: #{tpu_custom_call.1} parent=1 // pred_check_branch
      %308 = sbr.rel (0) target = $region33
    $region32: #{tpu_custom_call.1} parent=1 // pred_region
      %s310 = ssub.s32 128, 128
      %311 = vsyncadd [#allocation3], %s310
      %s313 = sshll.u32 [#allocation2], 4
      %s314 = int_to_ptr.vmem [resolvable:$true] %s313
      %316 = dma.vmem_to_hbm [thread:$0]  %s314, 128, %s7, [#allocation3]
    $region33: #{tpu_custom_call.1} parent=1 // pred_fallthru
      _
    // Predicated region
    $region34: #{tpu_custom_call.1} parent=1 // pred_check
      _
    $region35: #{tpu_custom_call.1} parent=1 // pred_check_branch
      %318 = sbr.rel (0) target = $region37
    $region36: #{tpu_custom_call.1} parent=1 // pred_region
      %s320 = ssub.s32 128, 128
      %321 = vsyncadd [#allocation5], %s320
      %s323 = sshll.u32 [#allocation4], 4
      %s324 = int_to_ptr.vmem [resolvable:$true] %s323
      %326 = dma.vmem_to_hbm [thread:$0]  %s324, 128, %s8, [#allocation5]
    $region37: #{tpu_custom_call.1} parent=1 // pred_fallthru
      _
    // Predicated region
    $region38: #{tpu_custom_call.1} parent=1 // pred_check
      _
    $region39: #{tpu_custom_call.1} parent=1 // pred_check_branch
      %328 = sbr.rel (0) target = $region41
    $region40: #{tpu_custom_call.1} parent=1 // pred_region
      %329 = dma.done [#allocation3], 128
    $region41: #{tpu_custom_call.1} parent=1 // pred_fallthru
      _
    // Predicated region
    $region42: #{tpu_custom_call.1} parent=1 // pred_check
      _
    $region43: #{tpu_custom_call.1} parent=1 // pred_check_branch
      %331 = sbr.rel (0) target = $region45
    $region44: #{tpu_custom_call.1} parent=1 // pred_region
      %332 = dma.done [#allocation5], 128
    $region45: #{tpu_custom_call.1} parent=1 // pred_fallthru
      _
    %333 = vsyncpa [#allocation3], 1
    %334 = vsyncpa [#allocation5], 1

</llo_original>
